<compile_context>
chip_gen: v7x
topology: tpu7x:2x2x1
jax: 0.10.0
libtpu: 0.0.40
codegen_flags: <defaults>
</compile_context>

<pallas_src>
import numpy as np
import jax
import jax.numpy as jnp
from jax import lax
from jax.experimental import pallas as pl
from jax.experimental.pallas import tpu as pltpu


def _round_up(x, m):
    return ((x + m - 1) // m) * m


# ----------------------------------------------------------------------------
# Pallas kernel (online-softmax over the key axis)
# ----------------------------------------------------------------------------
def _make_attention_kernel(block_k, sv_actual, need_mask):
    def kernel(q_ref, v_ref, o_ref, m_ref, l_ref, acc_ref):
        k = pl.program_id(2)

        @pl.when(k == 0)
        def _():
            m_ref[...] = jnp.full_like(m_ref, -jnp.inf)
            l_ref[...] = jnp.zeros_like(l_ref)
            acc_ref[...] = jnp.zeros_like(acc_ref)

        q = q_ref[...]                                  # (bq, Hp) bf16
        v = v_ref[...]                                  # (bk, Hp) bf16

        # scores = q @ v^T : contract the hidden axis directly on the MXU
        # (bf16 inputs, f32 accumulate), no materialized transpose.
        s = lax.dot_general(q, v, (((1,), (1,)), ((), ())),
                            preferred_element_type=jnp.float32)  # (bq, bk) f32

        if need_mask:
            key_idx = k * block_k + lax.broadcasted_iota(jnp.int32, s.shape, 1)
            s = jnp.where(key_idx < sv_actual, s, jnp.float32(-1e30))

        # online softmax update (all f32 elementwise math)
        m_prev = m_ref[...]
        m_new = jnp.maximum(m_prev, jnp.max(s, axis=-1, keepdims=True))
        alpha = jnp.exp(m_prev - m_new)
        p = jnp.exp(s - m_new)
        l_ref[...] = alpha * l_ref[...] + jnp.sum(p, axis=-1, keepdims=True)
        acc_ref[...] = alpha * acc_ref[...] + jnp.dot(
            p.astype(v.dtype), v, preferred_element_type=jnp.float32)
        m_ref[...] = m_new

        @pl.when(k == pl.num_programs(2) - 1)
        def _():
            # deferred normalization: one (bq, Hp) multiply, EUP reciprocal
            o_ref[...] = (acc_ref[...] *
                          pl.reciprocal(l_ref[...], approx=True)
                          ).astype(o_ref.dtype)

    return kernel


# ----------------------------------------------------------------------------
# wrapper
# ----------------------------------------------------------------------------
def attention(query, values, *, block_q=256, block_k=512):
    """Pallas dot-product attention.

    query:  (B, Sq, H)
    values: (B, Sv, H)
    returns context (B, Sq, H), same dtype as query.
    """
    B, Sq, H = query.shape
    Bv, Sv, Hv = values.shape
    assert B == Bv and H == Hv, "query / values batch and hidden dims must match"

    out_dtype = query.dtype

    # Lane-dense hidden dim (multiple of 128); bounded, sublane-aligned tiles.
    Hp = _round_up(max(H, 128), 128)
    bq = min(block_q, _round_up(Sq, 8))
    bk = min(block_k, _round_up(Sv, 8))
    Sq_p = _round_up(Sq, bq)
    Sv_p = _round_up(Sv, bk)

    # bf16 MXU inputs; zero-pad hidden (exact) and sequence axes (padded keys
    # are masked in-kernel, padded query rows are sliced off afterwards).
    q_p = jnp.pad(query.astype(jnp.bfloat16),
                  ((0, 0), (0, Sq_p - Sq), (0, Hp - H)))
    v_p = jnp.pad(values.astype(jnp.bfloat16),
                  ((0, 0), (0, Sv_p - Sv), (0, Hp - H)))

    grid = (B, Sq_p // bq, Sv_p // bk)
    need_mask = Sv_p != Sv
    kernel = _make_attention_kernel(bk, Sv, need_mask)

    cost = pl.CostEstimate(
        flops=4 * B * Sq_p * Sv_p * Hp,                 # two matmuls
        transcendentals=B * Sq_p * Sv_p,                # exp
        bytes_accessed=q_p.size * 2 + v_p.size * 2 + B * Sq_p * Hp * 4,
    )

    out = pl.pallas_call(
        kernel,
        out_shape=jax.ShapeDtypeStruct((B, Sq_p, Hp), jnp.float32),
        grid=grid,
        in_specs=[
            # query tile: one batch element, one query block (resident over K)
            pl.BlockSpec((None, bq, Hp), lambda b, i, k: (b, i, 0)),
            # values tile: streamed along the K grid axis
            pl.BlockSpec((None, bk, Hp), lambda b, i, k: (b, k, 0)),
        ],
        out_specs=pl.BlockSpec((None, bq, Hp), lambda b, i, k: (b, i, 0)),
        scratch_shapes=[
            pltpu.VMEM((bq, 1), jnp.float32),    # running max  m
            pltpu.VMEM((bq, 1), jnp.float32),    # running sum  l
            pltpu.VMEM((bq, Hp), jnp.float32),   # unnormalized context acc
        ],
        compiler_params=pltpu.CompilerParams(
            dimension_semantics=("parallel", "parallel", "arbitrary")),
        cost_estimate=cost,
    )(q_p, v_p)

    return out[:, :Sq, :H].astype(out_dtype)


# ----------------------------------------------------------------------------
# pure-JAX reference (same math as the PyTorch module)
# ----------------------------------------------------------------------------
def reference_attention(query, values):
    scores = jnp.einsum("bqh,bkh->bqk", query, values)
    weights = jax.nn.softmax(scores, axis=-1)
    return jnp.einsum("bqk,bkh->bqh", weights, values)


def _check(out, q, v, tol=1e-2):
    # The kernel feeds the MXU bf16 inputs; compare against the reference
    # evaluated on the same bf16-rounded inputs (softmax / accumulation stay
    # f32 in both) so the check isolates kernel bugs from intrinsic bf16
    # input rounding.
    qb = q.astype(jnp.bfloat16).astype(jnp.float32)
    vb = v.astype(jnp.bfloat16).astype(jnp.float32)
    ref = jax.block_until_ready(jax.jit(reference_attention)(qb, vb))
    np.testing.assert_allclose(np.asarray(out), np.asarray(ref),
                               rtol=tol, atol=tol)


if __name__ == "__main__":
    B, Sq, Sv, H = 2, 8, 8, 32

    key = jax.random.PRNGKey(0)
    kq, kv, kq1 = jax.random.split(key, 3)
    q = jax.random.normal(kq, (B, Sq, H), jnp.float32)
    v = jax.random.normal(kv, (B, Sv, H), jnp.float32)

    # full-sequence query (encoder-over-encoder style)
    out = jax.block_until_ready(attention(q, v))
    assert out.shape == (B, Sq, H) and out.dtype == jnp.float32
    _check(out, q, v)

    # single-step decoder query (B, 1, H), as used inside the pointer network
    q1 = jax.random.normal(kq1, (B, 1, H), jnp.float32)
    out1 = jax.block_until_ready(attention(q1, v))
    assert out1.shape == (B, 1, H)
    _check(out1, q1, v)

    # multi-tile path: exercises the K-axis online-softmax accumulator,
    # multiple query tiles, and the padded-key mask (Sv % block_k != 0).
    B2, Sq2, Sv2, H2 = 2, 48, 200, 32
    k2q, k2v = jax.random.split(jax.random.PRNGKey(1))
    q2 = jax.random.normal(k2q, (B2, Sq2, H2), jnp.float32)
    v2 = jax.random.normal(k2v, (B2, Sv2, H2), jnp.float32)
    out2 = jax.block_until_ready(attention(q2, v2, block_q=16, block_k=64))
    assert out2.shape == (B2, Sq2, H2)
    _check(out2, q2, v2)

    print("KERNEL_OK")
</pallas_src>

<mosaic_0001>
module attributes {stable_mosaic.version = 11 : i64} {
  func.func @kernel(%arg0: i32, %arg1: i32, %arg2: i32, %arg3: memref<1x8x128xbf16, #tpu.memory_space<vmem>>, %arg4: memref<1x8x128xbf16, #tpu.memory_space<vmem>>, %arg5: memref<1x8x128xf32, #tpu.memory_space<vmem>>, %arg6: memref<8x1xf32, #tpu.memory_space<vmem>>, %arg7: memref<8x1xf32, #tpu.memory_space<vmem>>, %arg8: memref<8x128xf32, #tpu.memory_space<vmem>>) attributes {dimension_semantics = [#tpu.dimension_semantics<parallel>, #tpu.dimension_semantics<parallel>, #tpu.dimension_semantics<arbitrary>], iteration_bounds = array<i64: 2, 1, 1>, scalar_prefetch = 0 : i64, scratch_operands = 3 : i64, tpu.core_type = #tpu.core_type<tc>, window_params = [{transform_indices = @transform_0, window_bounds = array<i64: 1, 8, 128>}, {transform_indices = @transform_1, window_bounds = array<i64: 1, 8, 128>}, {transform_indices = @transform_2, window_bounds = array<i64: 1, 8, 128>}]} {
    %c0_i32 = arith.constant 0 : i32
    %0 = arith.cmpi eq, %arg2, %c0_i32 : i32
    %1 = arith.extui %0 : i1 to i32
    %c0_i32_0 = arith.constant 0 : i32
    %2 = arith.cmpi ne, %1, %c0_i32_0 : i32
    scf.if %2 {
      %cst_23 = arith.constant 0xFF800000 : f32
      %34 = vector.broadcast %cst_23 : f32 to vector<8x1xf32>
      %c0_24 = arith.constant 0 : index
      %c0_25 = arith.constant 0 : index
      %35 = vector.load %arg6[%c0_24, %c0_25] : memref<8x1xf32, #tpu.memory_space<vmem>>, vector<8x1xf32>
      tpu.vector_store %arg6[%c0_24, %c0_25], %34 {strides = array<i32>} : memref<8x1xf32, #tpu.memory_space<vmem>>, vector<8x1xf32>,
      %cst_26 = arith.constant 0.000000e+00 : f32
      %36 = vector.broadcast %cst_26 : f32 to vector<8x1xf32>
      %c0_27 = arith.constant 0 : index
      %c0_28 = arith.constant 0 : index
      %37 = vector.load %arg7[%c0_27, %c0_28] : memref<8x1xf32, #tpu.memory_space<vmem>>, vector<8x1xf32>
      tpu.vector_store %arg7[%c0_27, %c0_28], %36 {strides = array<i32>} : memref<8x1xf32, #tpu.memory_space<vmem>>, vector<8x1xf32>,
      %cst_29 = arith.constant 0.000000e+00 : f32
      %38 = vector.broadcast %cst_29 : f32 to vector<8x128xf32>
      %c0_30 = arith.constant 0 : index
      %c0_31 = arith.constant 0 : index
      %39 = vector.load %arg8[%c0_30, %c0_31] : memref<8x128xf32, #tpu.memory_space<vmem>>, vector<8x128xf32>
      tpu.vector_store %arg8[%c0_30, %c0_31], %38 {strides = array<i32>} : memref<8x128xf32, #tpu.memory_space<vmem>>, vector<8x128xf32>,
    } else {
    }
    %c0 = arith.constant 0 : index
    %c0_1 = arith.constant 0 : index
    %c0_2 = arith.constant 0 : index
    %3 = vector.load %arg3[%c0, %c0_1, %c0_2] : memref<1x8x128xbf16, #tpu.memory_space<vmem>>, vector<1x8x128xbf16>
    %4 = vector.shape_cast %3 : vector<1x8x128xbf16> to vector<8x128xbf16>
    %c0_3 = arith.constant 0 : index
    %c0_4 = arith.constant 0 : index
    %c0_5 = arith.constant 0 : index
    %5 = vector.load %arg4[%c0_3, %c0_4, %c0_5] : memref<1x8x128xbf16, #tpu.memory_space<vmem>>, vector<1x8x128xbf16>
    %6 = vector.shape_cast %5 : vector<1x8x128xbf16> to vector<8x128xbf16>
    %cst = arith.constant dense<0.000000e+00> : vector<8x8xf32>
    %7 = tpu.matmul %4, %6, %cst {dimension_numbers = #tpu.dot_dimension_numbers<[1], [1], [0], [0], [0, 0, 1, 0], [], []>} : vector<8x128xbf16>, vector<8x128xbf16>, vector<8x8xf32> -> vector<8x8xf32>
    %c0_6 = arith.constant 0 : index
    %c0_7 = arith.constant 0 : index
    %8 = vector.load %arg6[%c0_6, %c0_7] : memref<8x1xf32, #tpu.memory_space<vmem>>, vector<8x1xf32>
    %cst_8 = arith.constant dense<0xFF800000> : vector<8xf32>
    %9 = vector.multi_reduction <maximumf>, %7, %cst_8 [1] : vector<8x8xf32> to vector<8xf32>
    %10 = vector.shape_cast %9 : vector<8xf32> to vector<8x1xf32>
    %11 = arith.maximumf %8, %10 : vector<8x1xf32>
    %12 = arith.subf %8, %11 : vector<8x1xf32>
    %13 = math.exp %12 : vector<8x1xf32>
    %14 = vector.broadcast %11 : vector<8x1xf32> to vector<8x8xf32>
    %15 = arith.subf %7, %14 : vector<8x8xf32>
    %16 = math.exp %15 : vector<8x8xf32>
    %c0_9 = arith.constant 0 : index
    %c0_10 = arith.constant 0 : index
    %17 = vector.load %arg7[%c0_9, %c0_10] : memref<8x1xf32, #tpu.memory_space<vmem>>, vector<8x1xf32>
    %18 = arith.mulf %13, %17 : vector<8x1xf32>
    %cst_11 = arith.constant dense<0.000000e+00> : vector<8xf32>
    %19 = vector.multi_reduction <add>, %16, %cst_11 [1] : vector<8x8xf32> to vector<8xf32>
    %20 = vector.shape_cast %19 : vector<8xf32> to vector<8x1xf32>
    %21 = arith.addf %18, %20 : vector<8x1xf32>
    %c0_12 = arith.constant 0 : index
    %c0_13 = arith.constant 0 : index
    %22 = vector.load %arg7[%c0_12, %c0_13] : memref<8x1xf32, #tpu.memory_space<vmem>>, vector<8x1xf32>
    tpu.vector_store %arg7[%c0_12, %c0_13], %21 {strides = array<i32>} : memref<8x1xf32, #tpu.memory_space<vmem>>, vector<8x1xf32>,
    %c0_14 = arith.constant 0 : index
    %c0_15 = arith.constant 0 : index
    %23 = vector.load %arg8[%c0_14, %c0_15] : memref<8x128xf32, #tpu.memory_space<vmem>>, vector<8x128xf32>
    %24 = vector.broadcast %13 : vector<8x1xf32> to vector<8x128xf32>
    %25 = arith.mulf %24, %23 : vector<8x128xf32>
    %26 = arith.truncf %16 : vector<8x8xf32> to vector<8x8xbf16>
    %cst_16 = arith.constant dense<0.000000e+00> : vector<8x128xf32>
    %27 = tpu.matmul %26, %6, %cst_16 {dimension_numbers = #tpu.dot_dimension_numbers<[1], [0], [0], [1], [0, 0, 1, 1], [], []>} : vector<8x8xbf16>, vector<8x128xbf16>, vector<8x128xf32> -> vector<8x128xf32>
    %28 = arith.addf %25, %27 : vector<8x128xf32>
    %c0_17 = arith.constant 0 : index
    %c0_18 = arith.constant 0 : index
    %29 = vector.load %arg8[%c0_17, %c0_18] : memref<8x128xf32, #tpu.memory_space<vmem>>, vector<8x128xf32>
    tpu.vector_store %arg8[%c0_17, %c0_18], %28 {strides = array<i32>} : memref<8x128xf32, #tpu.memory_space<vmem>>, vector<8x128xf32>,
    %c0_19 = arith.constant 0 : index
    %c0_20 = arith.constant 0 : index
    %30 = vector.load %arg6[%c0_19, %c0_20] : memref<8x1xf32, #tpu.memory_space<vmem>>, vector<8x1xf32>
    tpu.vector_store %arg6[%c0_19, %c0_20], %11 {strides = array<i32>} : memref<8x1xf32, #tpu.memory_space<vmem>>, vector<8x1xf32>,
    %c0_i32_21 = arith.constant 0 : i32
    %31 = arith.cmpi eq, %arg2, %c0_i32_21 : i32
    %32 = arith.extui %31 : i1 to i32
    %c0_i32_22 = arith.constant 0 : i32
    %33 = arith.cmpi ne, %32, %c0_i32_22 : i32
    scf.if %33 {
      %c0_23 = arith.constant 0 : index
      %c0_24 = arith.constant 0 : index
      %34 = vector.load %arg8[%c0_23, %c0_24] : memref<8x128xf32, #tpu.memory_space<vmem>>, vector<8x128xf32>
      %c0_25 = arith.constant 0 : index
      %c0_26 = arith.constant 0 : index
      %35 = vector.load %arg7[%c0_25, %c0_26] : memref<8x1xf32, #tpu.memory_space<vmem>>, vector<8x1xf32>
      %36 = tpu.reciprocal %35 {approx = true} : vector<8x1xf32> -> vector<8x1xf32>
      %37 = vector.broadcast %36 : vector<8x1xf32> to vector<8x128xf32>
      %38 = arith.mulf %34, %37 : vector<8x128xf32>
      %c0_27 = arith.constant 0 : index
      %c0_28 = arith.constant 0 : index
      %c0_29 = arith.constant 0 : index
      %39 = vector.load %arg5[%c0_27, %c0_28, %c0_29] : memref<1x8x128xf32, #tpu.memory_space<vmem>>, vector<1x8x128xf32>
      %40 = vector.shape_cast %39 : vector<1x8x128xf32> to vector<8x128xf32>
      %41 = vector.shape_cast %38 : vector<8x128xf32> to vector<1x8x128xf32>
      tpu.vector_store %arg5[%c0_27, %c0_28, %c0_29], %41 {strides = array<i32>} : memref<1x8x128xf32, #tpu.memory_space<vmem>>, vector<1x8x128xf32>,
    } else {
    }
    return
  }
  func.func @transform_0(%arg0: i32, %arg1: i32, %arg2: i32) -> (i32, i32, i32) {
    %c0_i32 = arith.constant 0 : i32
    %c0_i32_0 = arith.constant 0 : i32
    return %arg0, %arg1, %c0_i32 : i32, i32, i32
  }
  func.func @transform_1(%arg0: i32, %arg1: i32, %arg2: i32) -> (i32, i32, i32) {
    %c0_i32 = arith.constant 0 : i32
    %c0_i32_0 = arith.constant 0 : i32
    return %arg0, %arg2, %c0_i32 : i32, i32, i32
  }
  func.func @transform_2(%arg0: i32, %arg1: i32, %arg2: i32) -> (i32, i32, i32) {
    %c0_i32 = arith.constant 0 : i32
    %c0_i32_0 = arith.constant 0 : i32
    return %arg0, %arg1, %c0_i32 : i32, i32, i32
  }
}

</mosaic_0001>

<llo_original>
// kernel: tpu_custom_call.1
$region0: #{tpu_custom_call.1}
  #allocation0 [shape = 'u32[]', space=smem, size = 0x4, offset = 0x4, fixed_abs, tag = 'smem constant byte address 0x4 - core index']
  #allocation1 [shape = 'u32[144,128]{1,0:T(1,128)}', space=vmem, size = 0x12000, scoped, tag = 'internal scratch']
  #allocation2 [shape = 'f32[8,1]{1,0:T(8,128)}', space=vmem, size = 0x1000, scoped, tag = 'scratch operand']
  #allocation3 [shape = 'f32[8,1]{1,0:T(8,128)}', space=vmem, size = 0x1000, scoped, tag = 'scratch operand']
  #allocation4 [shape = 'f32[8,128]{1,0:T(8,128)}', space=vmem, size = 0x1000, scoped, tag = 'scratch operand']
  %s0 = inlined_call_operand.hbm [shape: bf16[2,8,128], index: 0, kind: input, shape index: {}]
  %s1 = inlined_call_operand.hbm [shape: bf16[2,8,128], index: 1, kind: input, shape index: {}]
  %s2 = inlined_call_operand.hbm [shape: f32[2,8,128], index: 2, kind: output, shape index: {}]
  %s3 = sld [smem:[#allocation0]]
  $region57: #{tpu_custom_call.1} parent=0
    _
  %s5 = ssub.s32 1, %s3
  %s6 = scalar_select 0, %s5, %s3
  $region1: #{tpu_custom_call.1} parent=0
    #allocation5 [shape = 'u8[4096]{0}', space=vmem, size = 0x1000, scoped, tag = 'input window, operand 0']
    #allocation6 [shape = 's32[2]{0}', space=sflag, size = 0x8, scoped, tag = 'scoped memory for tpu_custom_call.1']
    #allocation7 [shape = 's32[2]{0}', space=sflag, size = 0x8, scoped, tag = 'scoped memory for tpu_custom_call.1']
    #allocation8 [shape = 'u8[4096]{0}', space=vmem, size = 0x1000, scoped, tag = 'input window, operand 1']
    #allocation9 [shape = 's32[2]{0}', space=sflag, size = 0x8, scoped, tag = 'scoped memory for tpu_custom_call.1']
    #allocation10 [shape = 'u8[8192]{0}', space=vmem, size = 0x2000, scoped, tag = 'output window, operand 0']
    %7 = vsyncpa [#allocation6], 0
    %s8 = scalar_lea.sflag [#allocation6], 1
    %9 = vsyncpa %s8, 0
    %10 = vsyncpa [#allocation9], 0
    %s11 = scalar_lea.sflag [#allocation9], 1
    %12 = vsyncpa %s11, 0
    %13 = vsyncpa [#allocation7], 0
    %s14 = scalar_lea.sflag [#allocation7], 1
    %15 = vsyncpa %s14, 0
    loop: start=0, step=1, limit=4
    $region2: #{tpu_custom_call.1} parent=1 // loop_pre_header
      _
    $region3: #{tpu_custom_call.1} parent=1 // loop_header
      %s17 = sphi 0, %s21
      %p18 = scmp.ge.s32.totalorder %s17, 4
      %s24 = sphi 0, %s43
      %s25 = sphi 0, %s39
      %s26 = sphi 0, %s35
      %s27 = sphi 0, %s24
      %s28 = sphi 0, %s25
      %s29 = sphi 0, %s26
      %s30 = sphi 0, %s27
      %s31 = sphi 0, %s28
      %s32 = sphi 0, %s29
      %s48 = sphi 0, %s50
      %s51 = sphi 0, %s48
      %s52 = sphi 0, %s51
      %s68 = sphi 0, %s52
      %s76 = sphi 0, %s78
      %s79 = sphi 0, %s76
      %s80 = sphi 0, %s79
      %s96 = sphi 0, %s80
      %s104 = sphi 0, %s106
      %s107 = sphi 0, %s104
      %s108 = sphi 0, %s107
      %s124 = sphi 0, %s108
    $region4: #{tpu_custom_call.1} parent=1 // loop_header_branch
      %20 = sbr.rel (%p18) target = $region8
    $region5: #{tpu_custom_call.1} parent=1 // loop_body
      %s22 = ssub.s32 %s17, 1
      %s23 = ssub.s32 %s17, 2
      %s33 = sadd.s32 1, %s26
      %p34 = scmp.ge.s32.totalorder %s33, 1
      %s35 = scalar_select %p34, 0, %s33
      %s36 = sadd.s32 1, %s25
      %s37 = scalar_select %p34, %s36, %s25
      %p38 = scmp.ge.s32.totalorder %s37, 1
      %s39 = scalar_select %p38, 0, %s37
      %s40 = sadd.s32 1, %s24
      %s41 = scalar_select %p38, %s40, %s24
      %p42 = scmp.ge.s32.totalorder %s41, 2
      %s43 = scalar_select %p42, 0, %s41
      %s44 = ssub.s32 %s24, %s43
      %s45 = ssub.s32 %s25, %s39
      %s46 = sor.u32 %s44, %s45
      %p47 = scmp.eq.s32.totalorder %s46, 0
      %s49 = sadd.s32 %s48, 1
      %s50 = scalar_select %p47, %s48, %s49
      %p53 = pneg %p47
      %p54 = scmp.eq.s32.totalorder %s17, 1
      %p55 = por %p53, %p54
      %p56 = scmp.ne.s32.totalorder %s48, %s51
      %p57 = scmp.eq.s32.totalorder %s17, 0
      %p58 = por %p56, %p57
      %p59 = scmp.ne.s32.totalorder %s48, %s51
      %p60 = scmp.eq.s32.totalorder %s22, 1
      %p61 = por %p59, %p60
      %p62 = scmp.ne.s32.totalorder %s51, %s52
      %p63 = scmp.eq.s32.totalorder %s22, 0
      %p64 = por %p62, %p63
      %p65 = scmp.ne.s32.totalorder %s51, %s52
      %p66 = scmp.eq.s32.totalorder %s23, 1
      %p67 = por %p65, %p66
      %p69 = scmp.ne.s32.totalorder %s52, %s68
      %p70 = scmp.eq.s32.totalorder %s23, 0
      %p71 = por %p69, %p70
      %s72 = ssub.s32 %s24, %s43
      %s73 = ssub.s32 %s26, %s35
      %s74 = sor.u32 %s72, %s73
      %p75 = scmp.eq.s32.totalorder %s74, 0
      %s77 = sadd.s32 %s76, 1
      %s78 = scalar_select %p75, %s76, %s77
      %p81 = pneg %p75
      %p82 = scmp.eq.s32.totalorder %s17, 1
      %p83 = por %p81, %p82
      %p84 = scmp.ne.s32.totalorder %s76, %s79
      %p85 = scmp.eq.s32.totalorder %s17, 0
      %p86 = por %p84, %p85
      %p87 = scmp.ne.s32.totalorder %s76, %s79
      %p88 = scmp.eq.s32.totalorder %s22, 1
      %p89 = por %p87, %p88
      %p90 = scmp.ne.s32.totalorder %s79, %s80
      %p91 = scmp.eq.s32.totalorder %s22, 0
      %p92 = por %p90, %p91
      %p93 = scmp.ne.s32.totalorder %s79, %s80
      %p94 = scmp.eq.s32.totalorder %s23, 1
      %p95 = por %p93, %p94
      %p97 = scmp.ne.s32.totalorder %s80, %s96
      %p98 = scmp.eq.s32.totalorder %s23, 0
      %p99 = por %p97, %p98
      %s100 = ssub.s32 %s24, %s43
      %s101 = ssub.s32 %s25, %s39
      %s102 = sor.u32 %s100, %s101
      %p103 = scmp.eq.s32.totalorder %s102, 0
      %s105 = sadd.s32 %s104, 1
      %s106 = scalar_select %p103, %s104, %s105
      %p109 = pneg %p103
      %p110 = scmp.eq.s32.totalorder %s17, 1
      %p111 = por %p109, %p110
      %p112 = scmp.ne.s32.totalorder %s104, %s107
      %p113 = scmp.eq.s32.totalorder %s17, 0
      %p114 = por %p112, %p113
      %p115 = scmp.ne.s32.totalorder %s104, %s107
      %p116 = scmp.eq.s32.totalorder %s22, 1
      %p117 = por %p115, %p116
      %p118 = scmp.ne.s32.totalorder %s107, %s108
      %p119 = scmp.eq.s32.totalorder %s22, 0
      %p120 = por %p118, %p119
      %p121 = scmp.ne.s32.totalorder %s107, %s108
      %p122 = scmp.eq.s32.totalorder %s23, 1
      %p123 = por %p121, %p122
      %p125 = scmp.ne.s32.totalorder %s108, %s124
      %p126 = scmp.eq.s32.totalorder %s23, 0
      %p127 = por %p125, %p126
      %p128 = scmp.le.s32.totalorder 1, %s17
      %p129 = scmp.lt.s32.totalorder %s17, 3
      %p130 = pnand %p128, %p129
      %p131 = pneg %p130
      // Predicated region
      $region9: #{tpu_custom_call.1} parent=5 // pred_check
        _
      $region10: #{tpu_custom_call.1} parent=5 // pred_check_branch
        %133 = sbr.rel (%p130) target = $region12
      $region11: #{tpu_custom_call.1} parent=5 // pred_region
        %s134 = ssub.s32 %s17, 1
      $region12: #{tpu_custom_call.1} parent=5 // pred_fallthru
        _
      %p135 = scmp.lt.s32.totalorder %s17, 2
      // Predicated region
      $region13: #{tpu_custom_call.1} parent=5 // pred_check
        %p136 = pneg %p135
      $region14: #{tpu_custom_call.1} parent=5 // pred_check_branch
        %138 = sbr.rel (%p136) target = $region16
      $region15: #{tpu_custom_call.1} parent=5 // pred_region
        // Predicated region
        $region17: #{tpu_custom_call.1} parent=15 // pred_check
          %p139 = pneg %p58
        $region18: #{tpu_custom_call.1} parent=15 // pred_check_branch
          %141 = sbr.rel (%p139) target = $region20
        $region19: #{tpu_custom_call.1} parent=15 // pred_region
          %s142 = sand.u32 %s48, 1
          %s143 = scalar_lea.sflag [#allocation6], %s142
          %s144 = sand.u32 %s48, 1
          %s145 = smul.addr %s144, 4
          %s146 = scalar_lea.vmem [#allocation5], %s145
          %s148 = ssub.s32 64, 64
          %149 = vsyncadd %s143, %s148
          %s150 = sadd.s32 %s25, %s24
          %s151 = smul.addr %s150, 64
          %s152 = scalar_lea.hbm %s0, %s151
          %s154 = sshll.u32 %s146, 4
          %s155 = int_to_ptr.vmem [resolvable:$true] %s154
          %157 = dma.hbm_to_vmem [thread:$0]  %s152, 64, %s155, %s143
        $region20: #{tpu_custom_call.1} parent=15 // pred_fallthru
          _
        // Predicated region
        $region21: #{tpu_custom_call.1} parent=15 // pred_check
          %p158 = pneg %p86
        $region22: #{tpu_custom_call.1} parent=15 // pred_check_branch
          %160 = sbr.rel (%p158) target = $region24
        $region23: #{tpu_custom_call.1} parent=15 // pred_region
          %s161 = sand.u32 %s76, 1
          %s162 = scalar_lea.sflag [#allocation9], %s161
          %s163 = sand.u32 %s76, 1
          %s164 = smul.addr %s163, 4
          %s165 = scalar_lea.vmem [#allocation8], %s164
          %s167 = ssub.s32 64, 64
          %168 = vsyncadd %s162, %s167
          %s169 = sadd.s32 %s26, %s24
          %s170 = smul.addr %s169, 64
          %s171 = scalar_lea.hbm %s1, %s170
          %s173 = sshll.u32 %s165, 4
          %s174 = int_to_ptr.vmem [resolvable:$true] %s173
          %176 = dma.hbm_to_vmem [thread:$0]  %s171, 64, %s174, %s162
        $region24: #{tpu_custom_call.1} parent=15 // pred_fallthru
          _
      $region16: #{tpu_custom_call.1} parent=5 // pred_fallthru
        _
      %p177 = scmp.le.s32.totalorder 1, %s17
      %p178 = scmp.lt.s32.totalorder %s17, 3
      %p179 = pnand %p177, %p178
      %p180 = pneg %p179
      // Predicated region
      $region25: #{tpu_custom_call.1} parent=5 // pred_check
        _
      $region26: #{tpu_custom_call.1} parent=5 // pred_check_branch
        %182 = sbr.rel (%p179) target = $region28
      $region27: #{tpu_custom_call.1} parent=5 // pred_region
        %s183 = ssub.s32 %s17, 1
        %s184 = sand.u32 %s51, 1
        %s185 = scalar_lea.sflag [#allocation6], %s184
        %s186 = sand.u32 %s51, 1
        %s187 = smul.addr %s186, 4
        %s188 = scalar_lea.vmem [#allocation5], %s187
        // Predicated region
        $region29: #{tpu_custom_call.1} parent=27 // pred_check
          %p189 = pneg %p64
        $region30: #{tpu_custom_call.1} parent=27 // pred_check_branch
          %191 = sbr.rel (%p189) target = $region32
        $region31: #{tpu_custom_call.1} parent=27 // pred_region
          %192 = dma.done %s185, 64
        $region32: #{tpu_custom_call.1} parent=27 // pred_fallthru
          _
        %s193 = sand.u32 %s79, 1
        %s194 = scalar_lea.sflag [#allocation9], %s193
        %s195 = sand.u32 %s79, 1
        %s196 = smul.addr %s195, 4
        %s197 = scalar_lea.vmem [#allocation8], %s196
        // Predicated region
        $region33: #{tpu_custom_call.1} parent=27 // pred_check
          %p198 = pneg %p92
        $region34: #{tpu_custom_call.1} parent=27 // pred_check_branch
          %200 = sbr.rel (%p198) target = $region36
        $region35: #{tpu_custom_call.1} parent=27 // pred_region
          %201 = dma.done %s194, 64
        $region36: #{tpu_custom_call.1} parent=27 // pred_fallthru
          _
        %s202 = sand.u32 %s51, 1
        %s203 = scalar_lea.sflag [#allocation6], %s202
        %s204 = sand.u32 %s51, 1
        %s205 = smul.addr %s204, 4
        %s206 = scalar_lea.vmem [#allocation5], %s205
        %p207 = pneg %p64
        %p208 = pneg %p61
        %s209 = sand.u32 %s79, 1
        %s210 = scalar_lea.sflag [#allocation9], %s209
        %s211 = sand.u32 %s79, 1
        %s212 = smul.addr %s211, 4
        %s213 = scalar_lea.vmem [#allocation8], %s212
        %p214 = pneg %p92
        %p215 = pneg %p89
        %p216 = pneg %p120
        %p217 = pneg %p117
        %s218 = sand.u32 %s107, 1
        %s219 = scalar_lea.sflag [#allocation7], %s218
        %s220 = sand.u32 %s107, 1
        %s221 = smul.addr %s220, 8
        %s222 = scalar_lea.vmem [#allocation10], %s221
        %p224 = scmp.eq.s32.totalorder %s29, 0
        // Predicated region
        $region37: #{tpu_custom_call.1} parent=27 // pred_check
          %p225 = pneg %p224
        $region38: #{tpu_custom_call.1} parent=27 // pred_check_branch
          %227 = sbr.rel (%p225) target = $region40
        $region39: #{tpu_custom_call.1} parent=27 // pred_region
          %vm228 = vcmask 7168
          %229 = vst.msk [vmem:[#allocation2] sm:$0xff] %vm228, -inf
          %230 = vst.msk [vmem:[#allocation3] sm:$0xff] %vm228, 0.0
          %231 = vst [vmem:[#allocation4] sm:$0xff] 0.0
        $region40: #{tpu_custom_call.1} parent=27 // pred_fallthru
          _
        %v232 = vld [vmem:[%s188] sm:$0xf]
        %v233 = vld [vmem:[%s197] sm:$0xf]
        %234 = vmatprep.subr.bf16.mxu0 0
        %235 = vmatpush1.bf16.xpose.msra.mxu0 %v233
        %236 = vmatprep.subr.bf16.mxu0 0
        %237 = vmatpush1.bf16.xpose.msra.mxu0 0
        %238 = vmatprep.subr.bf16.mxu0 0
        %239 = vmatpush1.bf16.xpose.msra.mxu0 0
        %240 = vmatprep.subr.bf16.mxu0 0
        %241 = vmatpush1.bf16.xpose.msra.mxu0 0
        %242 = vmatprep.subr.bf16.mxu0 0
        %243 = vmatpush1.bf16.xpose.msra.mxu0 0
        %244 = vmatprep.subr.bf16.mxu0 0
        %245 = vmatpush1.bf16.xpose.msra.mxu0 0
        %246 = vmatprep.subr.bf16.mxu0 0
        %247 = vmatpush1.bf16.xpose.msra.mxu0 0
        %248 = vmatprep.subr.bf16.mxu0 0
        %249 = vmatpush1.bf16.xpose.msra.mxu0 0
        %250 = vmatprep.subr.bf16.mxu0 0
        %251 = vmatpush1.bf16.xpose.msra.mxu0 0
        %252 = vmatprep.subr.bf16.mxu0 0
        %253 = vmatpush1.bf16.xpose.msra.mxu0 0
        %254 = vmatprep.subr.bf16.mxu0 0
        %255 = vmatpush1.bf16.xpose.msra.mxu0 0
        %256 = vmatprep.subr.bf16.mxu0 0
        %257 = vmatpush1.bf16.xpose.msra.mxu0 0
        %258 = vmatprep.subr.bf16.mxu0 0
        %259 = vmatpush1.bf16.xpose.msra.mxu0 0
        %260 = vmatprep.subr.bf16.mxu0 0
        %261 = vmatpush1.bf16.xpose.msra.mxu0 0
        %262 = vmatprep.subr.bf16.mxu0 0
        %263 = vmatpush1.bf16.xpose.msra.mxu0 0
        %264 = vmatprep.subr.bf16.mxu0 0
        %265 = vmatpush1.bf16.xpose.msra.mxu0 0
        %266 = vmatprep.mubr.bf16.mxu0 0
        %267 = vmatmul.mubr.bf16.gmra.mrb[0].mxu0 %v232
        %v268 = vpop.f32.mrb[0].mxu0
        %v269 = vadd.f32 0.0, %v268
        %v270 = vpop.f32.mrb[0].mxu0
        %v271 = vpop.f32.mrb[0].mxu0
        %v272 = vpop.f32.mrb[0].mxu0
        %273 = vdwg.mxu0
        %v274 = vld [vmem:[#allocation2] sm:$0xff]
        %vm275 = vcmask 64512
        %v276 = vsel %vm275, %v269, -inf
        %277 = vmax.xlane.f32.xlu0 %v276
        %v278 = vpop.xlane.xlu0 %277
        %v279 = vmax.f32 %v274, %v278
        %v280 = vsub.f32 %v274, %v279
        %v281 = vmul.f32 %v280, 1.442695
        %v282 = vpow.pop %v281
        %284 = vset.pattern.permute.xlu0 0
        %285 = vperm.xlu0 %284, %v279
        %v286 = vpop.permute.xlu0 %285
        %v288 = vsub.f32 %v269, %v286
        %v289 = vmul.f32 %v288, 1.442695
        %v290 = vpow.pop %v289
        %v291 = vld [vmem:[#allocation3] sm:$0xff]
        %v292 = vmul.f32 %v282, %v291
        %v293 = vsel %vm275, %v290, 0.0
        %294 = vadd.xlane.f32.xlu0 %v293
        %v295 = vpop.xlane.xlu0 %294
        %v296 = vadd.f32 %v292, %v295
        %vm297 = vcmask 7168
        %298 = vst.msk [vmem:[#allocation3] sm:$0xff] %vm297, %v296
        %v299 = vld [vmem:[#allocation4] sm:$0xff]
        %301 = vset.pattern.permute.xlu0 0
        %302 = vperm.xlu0 %301, %v282
        %v303 = vpop.permute.xlu0 %302
        %v305 = vmul.f32 %v303, %v299
        %v306 = vpack.c.bf16 %v290, %v290
        %v308 = vsel %vm275, %v306, 0
        %vm310 = vcmask 1043456
        %v312 = vsel %vm310, %v233, 0
        %314 = vmatprep.subr.bf16.mxu0 0
        %315 = vmatpush1.bf16.msra.mxu0 %v312
        %316 = vmatprep.subr.bf16.mxu0 0
        %317 = vmatpush1.bf16.msra.mxu0 0
        %318 = vmatprep.subr.bf16.mxu0 0
        %319 = vmatpush1.bf16.msra.mxu0 0
        %320 = vmatprep.subr.bf16.mxu0 0
        %321 = vmatpush1.bf16.msra.mxu0 0
        %322 = vmatprep.subr.bf16.mxu0 0
        %323 = vmatpush1.bf16.msra.mxu0 0
        %324 = vmatprep.subr.bf16.mxu0 0
        %325 = vmatpush1.bf16.msra.mxu0 0
        %326 = vmatprep.subr.bf16.mxu0 0
        %327 = vmatpush1.bf16.msra.mxu0 0
        %328 = vmatprep.subr.bf16.mxu0 0
        %329 = vmatpush1.bf16.msra.mxu0 0
        %330 = vmatprep.subr.bf16.mxu0 0
        %331 = vmatpush1.bf16.msra.mxu0 0
        %332 = vmatprep.subr.bf16.mxu0 0
        %333 = vmatpush1.bf16.msra.mxu0 0
        %334 = vmatprep.subr.bf16.mxu0 0
        %335 = vmatpush1.bf16.msra.mxu0 0
        %336 = vmatprep.subr.bf16.mxu0 0
        %337 = vmatpush1.bf16.msra.mxu0 0
        %338 = vmatprep.subr.bf16.mxu0 0
        %339 = vmatpush1.bf16.msra.mxu0 0
        %340 = vmatprep.subr.bf16.mxu0 0
        %341 = vmatpush1.bf16.msra.mxu0 0
        %342 = vmatprep.subr.bf16.mxu0 0
        %343 = vmatpush1.bf16.msra.mxu0 0
        %344 = vmatprep.subr.bf16.mxu0 0
        %345 = vmatpush1.bf16.msra.mxu0 0
        %346 = vmatprep.mubr.bf16.mxu0 0
        %347 = vmatmul.mubr.bf16.gmra.mrb[0].mxu0 %v308
        %v348 = vpop.f32.mrb[0].mxu0
        %v349 = vadd.f32 0.0, %v348
        %v350 = vpop.f32.mrb[0].mxu0
        %v351 = vpop.f32.mrb[0].mxu0
        %v352 = vpop.f32.mrb[0].mxu0
        %353 = vdwg.mxu0
        %v354 = vadd.f32 %v305, %v349
        %355 = vst [vmem:[#allocation4] sm:$0xff] %v354
        %356 = vst.msk [vmem:[#allocation2] sm:$0xff] %vm297, %v279
        // Predicated region
        $region41: #{tpu_custom_call.1} parent=27 // pred_check
          %p357 = pneg %p224
        $region42: #{tpu_custom_call.1} parent=27 // pred_check_branch
          %359 = sbr.rel (%p357) target = $region44
        $region43: #{tpu_custom_call.1} parent=27 // pred_region
          %v360 = vld [vmem:[#allocation4] sm:$0xff]
          %v361 = vld [vmem:[#allocation3] sm:$0xff]
          %v362 = vrcp.pop %v361
          %364 = vset.pattern.permute.xlu0 0
          %365 = vperm.xlu0 %364, %v362
          %v366 = vpop.permute.xlu0 %365
          %v368 = vmul.f32 %v360, %v366
          %369 = vst [vmem:[%s222] sm:$0xff] %v368
        $region44: #{tpu_custom_call.1} parent=27 // pred_fallthru
          _
        %s370 = sand.u32 %s107, 1
        %s371 = scalar_lea.sflag [#allocation7], %s370
        %s372 = sand.u32 %s107, 1
        %s373 = smul.addr %s372, 8
        %s374 = scalar_lea.vmem [#allocation10], %s373
        // Predicated region
        $region45: #{tpu_custom_call.1} parent=27 // pred_check
          %p375 = pneg %p117
        $region46: #{tpu_custom_call.1} parent=27 // pred_check_branch
          %377 = sbr.rel (%p375) target = $region48
        $region47: #{tpu_custom_call.1} parent=27 // pred_region
          %s379 = ssub.s32 128, 128
          %380 = vsyncadd %s371, %s379
          %s381 = sadd.s32 %s28, %s27
          %s382 = smul.addr %s381, 128
          %s383 = scalar_lea.hbm %s2, %s382
          %s385 = sshll.u32 %s374, 4
          %s386 = int_to_ptr.vmem [resolvable:$true] %s385
          %388 = dma.vmem_to_hbm [thread:$0]  %s386, 128, %s383, %s371
        $region48: #{tpu_custom_call.1} parent=27 // pred_fallthru
          _
      $region28: #{tpu_custom_call.1} parent=5 // pred_fallthru
        _
      %p389 = scmp.le.s32.totalorder 2, %s17
      // Predicated region
      $region49: #{tpu_custom_call.1} parent=5 // pred_check
        %p390 = pneg %p389
      $region50: #{tpu_custom_call.1} parent=5 // pred_check_branch
        %392 = sbr.rel (%p390) target = $region52
      $region51: #{tpu_custom_call.1} parent=5 // pred_region
        %s393 = ssub.s32 %s17, 2
        // Predicated region
        $region53: #{tpu_custom_call.1} parent=51 // pred_check
          %p394 = pneg %p123
        $region54: #{tpu_custom_call.1} parent=51 // pred_check_branch
          %396 = sbr.rel (%p394) target = $region56
        $region55: #{tpu_custom_call.1} parent=51 // pred_region
          %s397 = sand.u32 %s108, 1
          %s398 = scalar_lea.sflag [#allocation7], %s397
          %s399 = sand.u32 %s108, 1
          %s400 = smul.addr %s399, 8
          %s401 = scalar_lea.vmem [#allocation10], %s400
          %402 = dma.done %s398, 128
        $region56: #{tpu_custom_call.1} parent=51 // pred_fallthru
          _
      $region52: #{tpu_custom_call.1} parent=5 // pred_fallthru
        _
    $region6: #{tpu_custom_call.1} parent=1 // loop_footer
      %s21 = sadd.s32 1, %s17
    $region7: #{tpu_custom_call.1} parent=1 // loop_footer_branch
      %16 = sbr.rel target = $region3
    $region8: #{tpu_custom_call.1} parent=1 // loop_exit
      _
    %403 = vsyncpa [#allocation6], 1
    %s404 = scalar_lea.sflag [#allocation6], 1
    %405 = vsyncpa %s404, 1
    %406 = vsyncpa [#allocation9], 1
    %s407 = scalar_lea.sflag [#allocation9], 1
    %408 = vsyncpa %s407, 1
    %409 = vsyncpa [#allocation7], 1
    %s410 = scalar_lea.sflag [#allocation7], 1
    %411 = vsyncpa %s410, 1

</llo_original>
